<compile_context>
chip_gen: v6e
topology: v6e:2x2x1
jax: 0.10.0
libtpu: 0.0.40
codegen_flags: <defaults>
</compile_context>

<pallas_src>
import functools

import jax
import jax.numpy as jnp
from jax.experimental import pallas as pl
from jax.experimental.pallas import tpu as pltpu


def _round_up(x: int, m: int) -> int:
    return (x + m - 1) // m * m


def _round_down(x: int, m: int) -> int:
    return x // m * m


def _tpu_budget():
    """Returns (usable VMEM bytes, TensorCore count), generation-aware.

    ~20% headroom is left for Mosaic internal scratch / semaphores.  Falls back
    to conservative v7x-like numbers (64 MiB, 1 core) if the query fails.
    """
    vmem_cap, num_cores = 64 << 20, 1
    try:
        info = pltpu.get_tpu_info()
        vmem_cap = int(getattr(info, "vmem_capacity_bytes", vmem_cap))
        for attr in ("num_cores", "core_count", "tensorcore_count"):
            v = getattr(info, attr, None)
            if v:
                num_cores = int(v)
                break
    except Exception:
        pass
    return int(vmem_cap * 0.8), num_cores


def prepare_atomic_linear_params(w, b, *, compute_dtype=None):
    """One-time parameter prep (call at load time, NOT per forward call).

    w: [IN, OUT]  (transpose torch's [OUT, IN] layout first)
    b: [OUT]
    Casts W once to the MXU compute dtype and shapes the bias as a f32 [1, OUT]
    row so the per-call wrapper does zero work on the parameters.
    """
    if compute_dtype is not None:
        w = w.astype(compute_dtype)
    b = b.astype(jnp.float32).reshape(1, -1)
    return w, b


def atomic_linear_kernel(x_ref, w_ref, b_ref, o_ref, *, compute_dtype):
    # x_ref: [TM, IN], w_ref: [IN, OUT_T], b_ref: [1, OUT_T] (f32), o_ref: [TM, OUT_T]
    x = x_ref[...]
    if compute_dtype is not None:
        # In-kernel VPU cast: DMA f32 activations once, cast under the MXU.
        x = x.astype(compute_dtype)
    y = jnp.dot(x, w_ref[...], preferred_element_type=jnp.float32)
    o_ref[...] = (y + b_ref[...]).astype(o_ref.dtype)


def atomic_linear(x, w, b, *, compute_dtype=None, out_dtype=None,
                  max_tile_m=2048, tile_n=512, force_out_tiling=False):
    """Pallas TPU forward of AtomicLinear / torch.nn.Linear: y = x @ w + b.

    x : [N, IN]    node features (rows = atoms)
    w : [IN, OUT]  weight (transposed from torch's [OUT, IN]); ideally pre-cast
                   once via prepare_atomic_linear_params
    b : [OUT] or [1, OUT] bias
    compute_dtype : optional MXU compute dtype (e.g. jnp.bfloat16); the cast of
                    x happens inside the kernel, accumulation stays f32.
    out_dtype     : optional output dtype (defaults to x.dtype).
    """
    N, IN = x.shape
    IN_w, OUT = w.shape
    assert IN_w == IN, "weight must be [IN, OUT]"
    if out_dtype is None:
        out_dtype = x.dtype
    if N == 0:                                        # empty atom batch
        return jnp.zeros((0, OUT), out_dtype)

    # Parameter massaging: all of these are no-ops when the params were
    # prepared once at load time with prepare_atomic_linear_params.
    if compute_dtype is not None and w.dtype != jnp.dtype(compute_dtype):
        w = w.astype(compute_dtype)
    if b.ndim == 1:
        b = b.reshape(1, OUT)
    if b.dtype != jnp.float32:
        b = b.astype(jnp.float32)

    x_item = jnp.dtype(x.dtype).itemsize
    w_item = jnp.dtype(w.dtype).itemsize
    o_item = jnp.dtype(out_dtype).itemsize
    c_item = jnp.dtype(compute_dtype).itemsize if compute_dtype is not None else 0

    budget, num_cores = _tpu_budget()

    # ---- resident W vs. OUT-tiled W ------------------------------------------
    w_bytes = IN * OUT * w_item
    out_tiled = force_out_tiling or (2 * w_bytes > budget // 2 and OUT > 256)
    if out_tiled:
        tile_n = max(128, min(_round_down(max(tile_n, 128), 128),
                              max(_round_down(OUT, 128), 128)))
        grid_n = pl.cdiv(OUT, tile_n)
        out_tile = tile_n
    else:
        grid_n = 1
        out_tile = OUT

    # ---- tile_m from the per-generation VMEM budget ---------------------------
    # Sublane minimum of the row axis: driven by the narrowest of x / out dtype.
    sublane = max(32 // max(x_item, 1), 32 // max(o_item, 1), 8)
    per_row = (2 * IN * x_item                  # x tile, double-buffered
               + 2 * out_tile * o_item          # output tile, double-buffered
               + out_tile * 4                   # f32 matmul result
               + IN * c_item)                   # in-kernel compute-dtype copy of x
    resident = 2 * IN * out_tile * w_item + 2 * 8 * out_tile * 4   # W + bias (worst case)
    avail = max(budget - resident, per_row * sublane)
    tile_m = _round_down(avail // per_row, sublane)
    tile_m = max(sublane, min(tile_m, max_tile_m, _round_up(N, sublane)))

    # Only split rows across TensorCores when there are >= 2 of them and each
    # core still gets a meaningful (>= 256-row) tile; otherwise one big tile.
    if num_cores >= 2 and pl.cdiv(N, tile_m) < num_cores and N >= num_cores * 256:
        tile_m = max(sublane, _round_up(pl.cdiv(N, num_cores), sublane))
    grid_m = pl.cdiv(N, tile_m)

    # ---- itemized VMEM limit, capped at ~80% of physical capacity -------------
    est = (2 * tile_m * IN * x_item
           + 2 * IN * out_tile * w_item
           + 2 * 8 * out_tile * 4
           + 2 * tile_m * out_tile * o_item
           + tile_m * out_tile * 4
           + tile_m * IN * c_item)
    vmem_limit = int(min(budget, max(est + (4 << 20), 32 << 20)))

    kernel = functools.partial(atomic_linear_kernel, compute_dtype=compute_dtype)

    def build(single_buffer_params: bool):
        if out_tiled:
            in_specs = [
                pl.BlockSpec((tile_m, IN), lambda i, j: (i, 0)),     # x reused across j
                pl.BlockSpec((IN, tile_n), lambda i, j: (0, j)),     # W column tile
                pl.BlockSpec((1, tile_n), lambda i, j: (0, j)),      # bias column tile
            ]
            out_specs = pl.BlockSpec((tile_m, tile_n), lambda i, j: (i, j))
            grid = (grid_m, grid_n)
            dims = ("parallel", "parallel")
        else:
            pm = {"pipeline_mode": pl.Buffered(1)} if single_buffer_params else {}
            in_specs = [
                pl.BlockSpec((tile_m, IN), lambda i: (i, 0)),        # x row tile
                pl.BlockSpec((IN, OUT), lambda i: (0, 0), **pm),     # grid-invariant W
                pl.BlockSpec((1, OUT), lambda i: (0, 0), **pm),      # grid-invariant b
            ]
            out_specs = pl.BlockSpec((tile_m, OUT), lambda i: (i, 0))
            grid = (grid_m,)
            dims = ("parallel",)
        return pl.pallas_call(
            kernel,
            out_shape=jax.ShapeDtypeStruct((N, OUT), out_dtype),
            grid_spec=pltpu.PrefetchScalarGridSpec(
                num_scalar_prefetch=0, grid=grid,
                in_specs=in_specs, out_specs=out_specs),
            compiler_params=pltpu.CompilerParams(
                dimension_semantics=dims, vmem_limit_bytes=vmem_limit),
        )

    try:
        return build(single_buffer_params=True)(x, w, b)
    except Exception:
        # Conservative fallback if this JAX build rejects Buffered(1) specs.
        return build(single_buffer_params=False)(x, w, b)


def _init_linear(key, fan_in, fan_out, dtype=jnp.float32):
    """torch.nn.Linear-style init (kaiming_uniform weight + uniform bias).
    Returned weight is already transposed to [fan_in, fan_out]."""
    kw, kb = jax.random.split(key)
    bound = 1.0 / float(fan_in) ** 0.5
    w = jax.random.uniform(kw, (fan_in, fan_out), dtype, -bound, bound)
    b = jax.random.uniform(kb, (fan_out,), dtype, -bound, bound)
    return w, b


if __name__ == "__main__":
    # Small shapes consistent with the module: N atoms, linear feature dims.
    N = 16
    IN_FEATURES = 16
    OUT_FEATURES = 8

    key = jax.random.PRNGKey(0)
    kx, kl = jax.random.split(key)
    x = jax.random.normal(kx, (N, IN_FEATURES), jnp.float32)
    w, b = _init_linear(kl, IN_FEATURES, OUT_FEATURES)

    # Pure-JAX reference.
    y_ref = x @ w + b

    # f32 path (resident single-buffered W, no pad/slice passes).
    y = jax.block_until_ready(atomic_linear(x, w, b))
    assert y.shape == (N, OUT_FEATURES)
    assert jnp.allclose(y, y_ref, atol=1e-5, rtol=1e-5)

    # bf16 compute path: weight pre-cast once, activation cast in-kernel, f32 acc.
    w_bf16, b_prep = prepare_atomic_linear_params(w, b, compute_dtype=jnp.bfloat16)
    y_bf16 = jax.block_until_ready(
        atomic_linear(x, w_bf16, b_prep, compute_dtype=jnp.bfloat16))
    assert jnp.allclose(y_bf16, y_ref, atol=3e-2, rtol=3e-2)

    # Output-dtype knob: bf16 stores (halves output HBM traffic).
    y_out16 = jax.block_until_ready(
        atomic_linear(x, w_bf16, b_prep, compute_dtype=jnp.bfloat16,
                      out_dtype=jnp.bfloat16))
    assert y_out16.dtype == jnp.bfloat16
    assert jnp.allclose(y_out16.astype(jnp.float32), y_ref, atol=5e-2, rtol=5e-2)

    # Exercise the OUT-tiled (large-weight) 2-D grid path on a modest shape.
    N2, IN2, OUT2 = 64, 256, 384
    kx2, kl2 = jax.random.split(jax.random.PRNGKey(1))
    x2 = jax.random.normal(kx2, (N2, IN2), jnp.float32)
    w2, b2 = _init_linear(kl2, IN2, OUT2)
    y2 = jax.block_until_ready(
        atomic_linear(x2, w2, b2, tile_n=128, force_out_tiling=True))
    assert jnp.allclose(y2, x2 @ w2 + b2, atol=1e-4, rtol=1e-4)

    # Empty atom batch guard.
    y_empty = atomic_linear(jnp.zeros((0, IN_FEATURES), jnp.float32), w, b)
    assert y_empty.shape == (0, OUT_FEATURES)

    # Mimic the dict-in / dict-out contract of the module:
    #   data[out_field] = self.linear(data[in_field])
    data = {"node_features": x}
    data["node_features"] = atomic_linear(data["node_features"], w, b)

    print("KERNEL_OK")
</pallas_src>

<mosaic_0001>
module attributes {stable_mosaic.version = 11 : i64} {
  func.func @atomic_linear_kernel(%arg0: i32, %arg1: memref<16x16xf32, #tpu.memory_space<vmem>>, %arg2: memref<16x8xf32, #tpu.memory_space<vmem>>, %arg3: memref<1x8xf32, #tpu.memory_space<vmem>>, %arg4: memref<16x8xf32, #tpu.memory_space<vmem>>) attributes {dimension_semantics = [#tpu.dimension_semantics<parallel>], iteration_bounds = array<i64: 1>, scalar_prefetch = 0 : i64, scratch_operands = 0 : i64, tpu.core_type = #tpu.core_type<tc>, window_params = [{transform_indices = @transform_0, window_bounds = array<i64: 16, 16>}, {pipeline_mode = #tpu.pipeline_mode<synchronous>, transform_indices = @transform_1, window_bounds = array<i64: 16, 8>}, {pipeline_mode = #tpu.pipeline_mode<synchronous>, transform_indices = @transform_2, window_bounds = array<i64: 1, 8>}, {transform_indices = @transform_3, window_bounds = array<i64: 16, 8>}]} {
    %c0 = arith.constant 0 : index
    %c0_0 = arith.constant 0 : index
    %0 = vector.load %arg1[%c0, %c0_0] : memref<16x16xf32, #tpu.memory_space<vmem>>, vector<16x16xf32>
    %c0_1 = arith.constant 0 : index
    %c0_2 = arith.constant 0 : index
    %1 = vector.load %arg2[%c0_1, %c0_2] : memref<16x8xf32, #tpu.memory_space<vmem>>, vector<16x8xf32>
    %cst = arith.constant dense<0.000000e+00> : vector<16x8xf32>
    %2 = tpu.matmul %0, %1, %cst {dimension_numbers = #tpu.dot_dimension_numbers<[1], [0], [0], [1], [0, 0, 1, 1], [], []>} : vector<16x16xf32>, vector<16x8xf32>, vector<16x8xf32> -> vector<16x8xf32>
    %c0_3 = arith.constant 0 : index
    %c0_4 = arith.constant 0 : index
    %3 = vector.load %arg3[%c0_3, %c0_4] : memref<1x8xf32, #tpu.memory_space<vmem>>, vector<1x8xf32>
    %4 = vector.broadcast %3 : vector<1x8xf32> to vector<16x8xf32>
    %5 = arith.addf %2, %4 : vector<16x8xf32>
    %c0_5 = arith.constant 0 : index
    %c0_6 = arith.constant 0 : index
    %6 = vector.load %arg4[%c0_5, %c0_6] : memref<16x8xf32, #tpu.memory_space<vmem>>, vector<16x8xf32>
    tpu.vector_store %arg4[%c0_5, %c0_6], %5 {strides = array<i32>} : memref<16x8xf32, #tpu.memory_space<vmem>>, vector<16x8xf32>,
    return
  }
  func.func @transform_0(%arg0: i32) -> (i32, i32) {
    %c0_i32 = arith.constant 0 : i32
    %c0_i32_0 = arith.constant 0 : i32
    return %arg0, %c0_i32 : i32, i32
  }
  func.func @transform_1(%arg0: i32) -> (i32, i32) {
    %c0_i32 = arith.constant 0 : i32
    %c0_i32_0 = arith.constant 0 : i32
    %c0_i32_1 = arith.constant 0 : i32
    return %c0_i32, %c0_i32_0 : i32, i32
  }
  func.func @transform_2(%arg0: i32) -> (i32, i32) {
    %c0_i32 = arith.constant 0 : i32
    %c0_i32_0 = arith.constant 0 : i32
    %c0_i32_1 = arith.constant 0 : i32
    return %c0_i32, %c0_i32_0 : i32, i32
  }
  func.func @transform_3(%arg0: i32) -> (i32, i32) {
    %c0_i32 = arith.constant 0 : i32
    %c0_i32_0 = arith.constant 0 : i32
    return %arg0, %c0_i32 : i32, i32
  }
}

module attributes {stable_mosaic.version = 11 : i64} {
  func.func @atomic_linear_kernel(%arg0: i32, %arg1: memref<16x16xf32, #tpu.memory_space<vmem>>, %arg2: memref<16x8xf32, #tpu.memory_space<vmem>>, %arg3: memref<1x8xf32, #tpu.memory_space<vmem>>, %arg4: memref<16x8xf32, #tpu.memory_space<vmem>>) attributes {dimension_semantics = [#tpu.dimension_semantics<parallel>], iteration_bounds = array<i64: 1>, scalar_prefetch = 0 : i64, scratch_operands = 0 : i64, tpu.core_type = #tpu.core_type<tc>, window_params = [{transform_indices = @transform_0, window_bounds = array<i64: 16, 16>}, {pipeline_mode = #tpu.pipeline_mode<synchronous>, transform_indices = @transform_1, window_bounds = array<i64: 16, 8>}, {pipeline_mode = #tpu.pipeline_mode<synchronous>, transform_indices = @transform_2, window_bounds = array<i64: 1, 8>}, {transform_indices = @transform_3, window_bounds = array<i64: 16, 8>}]} {
    %c0 = arith.constant 0 : index
    %c0_0 = arith.constant 0 : index
    %0 = vector.load %arg1[%c0, %c0_0] : memref<16x16xf32, #tpu.memory_space<vmem>>, vector<16x16xf32>
    %c0_1 = arith.constant 0 : index
    %c0_2 = arith.constant 0 : index
    %1 = vector.load %arg2[%c0_1, %c0_2] : memref<16x8xf32, #tpu.memory_space<vmem>>, vector<16x8xf32>
    %cst = arith.constant dense<0.000000e+00> : vector<16x8xf32>
    %2 = tpu.matmul %0, %1, %cst {dimension_numbers = #tpu.dot_dimension_numbers<[1], [0], [0], [1], [0, 0, 1, 1], [], []>} : vector<16x16xf32>, vector<16x8xf32>, vector<16x8xf32> -> vector<16x8xf32>
    %c0_3 = arith.constant 0 : index
    %c0_4 = arith.constant 0 : index
    %3 = vector.load %arg3[%c0_3, %c0_4] : memref<1x8xf32, #tpu.memory_space<vmem>>, vector<1x8xf32>
    %4 = vector.broadcast %3 : vector<1x8xf32> to vector<16x8xf32>
    %5 = arith.addf %2, %4 : vector<16x8xf32>
    %c0_5 = arith.constant 0 : index
    %c0_6 = arith.constant 0 : index
    %6 = vector.load %arg4[%c0_5, %c0_6] : memref<16x8xf32, #tpu.memory_space<vmem>>, vector<16x8xf32>
    tpu.vector_store %arg4[%c0_5, %c0_6], %5 {strides = array<i32>} : memref<16x8xf32, #tpu.memory_space<vmem>>, vector<16x8xf32>,
    return
  }
  func.func @transform_0(%arg0: i32) -> (i32, i32) {
    %c0_i32 = arith.constant 0 : i32
    %c0_i32_0 = arith.constant 0 : i32
    return %arg0, %c0_i32 : i32, i32
  }
  func.func @transform_1(%arg0: i32) -> (i32, i32) {
    %c0_i32 = arith.constant 0 : i32
    %c0_i32_0 = arith.constant 0 : i32
    %c0_i32_1 = arith.constant 0 : i32
    return %c0_i32, %c0_i32_0 : i32, i32
  }
  func.func @transform_2(%arg0: i32) -> (i32, i32) {
    %c0_i32 = arith.constant 0 : i32
    %c0_i32_0 = arith.constant 0 : i32
    %c0_i32_1 = arith.constant 0 : i32
    return %c0_i32, %c0_i32_0 : i32, i32
  }
  func.func @transform_3(%arg0: i32) -> (i32, i32) {
    %c0_i32 = arith.constant 0 : i32
    %c0_i32_0 = arith.constant 0 : i32
    return %arg0, %c0_i32 : i32, i32
  }
}

</mosaic_0001>

<llo_original>
// kernel: tpu_custom_call.1
$region0: #{tpu_custom_call.1}
  #allocation0 [shape = 'u32[]', space=smem, size = 0x4, offset = 0x4, fixed_abs, tag = 'smem constant byte address 0x4 - core index']
  #allocation1 [shape = 'u32[144,128]{1,0:T(1,128)}', space=vmem, size = 0x12000, scoped, tag = 'internal scratch']
  %s0 = inlined_call_operand.vmem [shape: f32[16,16], index: 0, kind: input, shape index: {}]
  %s1 = inlined_call_operand.vmem [shape: f32[16,8], index: 1, kind: input, shape index: {}]
  %s2 = inlined_call_operand.vmem [shape: f32[1,8], index: 2, kind: input, shape index: {}]
  %s3 = inlined_call_operand.vmem [shape: f32[16,8], index: 3, kind: output, shape index: {}]
  %s4 = sld [smem:[#allocation0]]
  $region22: #{tpu_custom_call.1} parent=0
    _
  %s6 = ssub.s32 1, %s4
  %s7 = scalar_select 0, %s6, %s4
  // Predicated region
  $region2: #{tpu_custom_call.1} parent=0 // pred_check
    _
  $region3: #{tpu_custom_call.1} parent=0 // pred_check_branch
    %9 = sbr.rel (0) target = $region5
  $region4: #{tpu_custom_call.1} parent=0 // pred_region
    _
  $region5: #{tpu_custom_call.1} parent=0 // pred_fallthru
    _
  // Predicated region
  $region6: #{tpu_custom_call.1} parent=0 // pred_check
    _
  $region7: #{tpu_custom_call.1} parent=0 // pred_check_branch
    %11 = sbr.rel (0) target = $region9
  $region8: #{tpu_custom_call.1} parent=0 // pred_region
    _
  $region9: #{tpu_custom_call.1} parent=0 // pred_fallthru
    _
  // Predicated region
  $region10: #{tpu_custom_call.1} parent=0 // pred_check
    _
  $region11: #{tpu_custom_call.1} parent=0 // pred_check_branch
    %13 = sbr.rel (0) target = $region13
  $region12: #{tpu_custom_call.1} parent=0 // pred_region
    _
  $region13: #{tpu_custom_call.1} parent=0 // pred_fallthru
    _
  %v14 = vld [vmem:[%s0] sm:$0xff]
  %v15 = vld [vmem:[%s0 + $0x8] sm:$0xff]
  %v16 = vld [vmem:[%s1] sm:$0xff]
  %v17 = vld [vmem:[%s1 + $0x8] sm:$0xff]
  %v18 = vld [vmem:[%s2] sm:$0x1]
  %v20 = vlaneseq
  %v21 = vshrl.u32 %v20, 7
  %v22 = vsub.s32 0, %v21
  %v23 = vrot.slane %v18, %v22
  %vm25 = vcmask 130048
  %v27 = vsel %vm25, %v14, 0
  %v30 = vsel %vm25, %v15, 0
  %32 = vmatprep.subr.mxu0 0.0
  %33 = vmatpush1.msra.mxu0 0.0
  %34 = vmatprep.subr.mxu0 0.0
  %35 = vmatpush1.msra.mxu0 0.0
  %36 = vmatprep.subr.mxu0 0.0
  %37 = vmatpush1.msra.mxu0 0.0
  %38 = vmatprep.subr.mxu0 0.0
  %39 = vmatpush1.msra.mxu0 0.0
  %40 = vmatprep.subr.mxu0 0.0
  %41 = vmatpush1.msra.mxu0 0.0
  %42 = vmatprep.subr.mxu0 0.0
  %43 = vmatpush1.msra.mxu0 0.0
  %44 = vmatprep.subr.mxu0 0.0
  %45 = vmatpush1.msra.mxu0 0.0
  %46 = vmatprep.subr.mxu0 0.0
  %47 = vmatpush1.msra.mxu0 0.0
  %48 = vmatprep.subr.mxu0 0.0
  %49 = vmatpush1.msra.mxu0 0.0
  %50 = vmatprep.subr.mxu0 0.0
  %51 = vmatpush1.msra.mxu0 0.0
  %52 = vmatprep.subr.mxu0 0.0
  %53 = vmatpush1.msra.mxu0 0.0
  %54 = vmatprep.subr.mxu0 0.0
  %55 = vmatpush1.msra.mxu0 0.0
  %56 = vmatprep.subr.mxu0 0.0
  %57 = vmatpush1.msra.mxu0 0.0
  %58 = vmatprep.subr.mxu0 0.0
  %59 = vmatpush1.msra.mxu0 0.0
  %60 = vmatprep.subr.mxu0 0.0
  %61 = vmatpush1.msra.mxu0 %v17
  %62 = vmatprep.subr.mxu0 0.0
  %63 = vmatpush1.msra.mxu0 %v16
  %64 = vmatprep.subr.mxu0 0.0
  %65 = vmatpush2.msra.mxu0 0.0
  %66 = vmatprep.subr.mxu0 0.0
  %67 = vmatpush2.msra.mxu0 0.0
  %68 = vmatprep.subr.mxu0 0.0
  %69 = vmatpush2.msra.mxu0 0.0
  %70 = vmatprep.subr.mxu0 0.0
  %71 = vmatpush2.msra.mxu0 0.0
  %72 = vmatprep.subr.mxu0 0.0
  %73 = vmatpush2.msra.mxu0 0.0
  %74 = vmatprep.subr.mxu0 0.0
  %75 = vmatpush2.msra.mxu0 0.0
  %76 = vmatprep.subr.mxu0 0.0
  %77 = vmatpush2.msra.mxu0 0.0
  %78 = vmatprep.subr.mxu0 0.0
  %79 = vmatpush2.msra.mxu0 0.0
  %80 = vmatprep.subr.mxu0 0.0
  %81 = vmatpush2.msra.mxu0 0.0
  %82 = vmatprep.subr.mxu0 0.0
  %83 = vmatpush2.msra.mxu0 0.0
  %84 = vmatprep.subr.mxu0 0.0
  %85 = vmatpush2.msra.mxu0 0.0
  %86 = vmatprep.subr.mxu0 0.0
  %87 = vmatpush2.msra.mxu0 0.0
  %88 = vmatprep.subr.mxu0 0.0
  %89 = vmatpush2.msra.mxu0 0.0
  %90 = vmatprep.subr.mxu0 0.0
  %91 = vmatpush2.msra.mxu0 0.0
  %92 = vmatprep.subr.mxu0 0.0
  %93 = vmatpush2.msra.mxu0 0.0
  %94 = vmatprep.subr.mxu0 0.0
  %95 = vmatpush2.msra.mxu0 0.0
  %96 = vmatprep.mubr.f32.mxu0 0.0
  %97 = vmatmul.mubr.f32.gmra.mxu0 %v27
  %v98 = vpop.f32.mrf.mxu0
  %v99 = vadd.f32 %v23, %v98
  %v100 = vpop.f32.mrf.mxu0
  %101 = vmatprep.mubr.f32.mxu0 0.0
  %102 = vmatmul.mubr.f32.gmra.mxu0 %v30
  %v103 = vpop.f32.mrf.mxu0
  %v104 = vadd.f32 %v23, %v103
  %v105 = vpop.f32.mrf.mxu0
  %106 = vdwg.mxu0
  %vm107 = vcmask 64512
  %108 = vst.msk [vmem:[%s3] sm:$0xff] %vm107, %v99
  %109 = vst.msk [vmem:[%s3 + $0x8] sm:$0xff] %vm107, %v104
  // Predicated region
  $region14: #{tpu_custom_call.1} parent=0 // pred_check
    _
  $region15: #{tpu_custom_call.1} parent=0 // pred_check_branch
    %111 = sbr.rel (0) target = $region17
  $region16: #{tpu_custom_call.1} parent=0 // pred_region
    _
  $region17: #{tpu_custom_call.1} parent=0 // pred_fallthru
    _
  // Predicated region
  $region18: #{tpu_custom_call.1} parent=0 // pred_check
    _
  $region19: #{tpu_custom_call.1} parent=0 // pred_check_branch
    %113 = sbr.rel (0) target = $region21
  $region20: #{tpu_custom_call.1} parent=0 // pred_region
    _
  $region21: #{tpu_custom_call.1} parent=0 // pred_fallthru
    _

// kernel: tpu_custom_call.1
$region0: #{tpu_custom_call.1}
  #allocation0 [shape = 'u32[]', space=smem, size = 0x4, offset = 0x4, fixed_abs, tag = 'smem constant byte address 0x4 - core index']
  #allocation1 [shape = 'u32[144,128]{1,0:T(1,128)}', space=vmem, size = 0x12000, scoped, tag = 'internal scratch']
  %s0 = inlined_call_operand.vmem [shape: f32[16,16], index: 0, kind: input, shape index: {}]
  %s1 = inlined_call_operand.vmem [shape: f32[16,8], index: 1, kind: input, shape index: {}]
  %s2 = inlined_call_operand.vmem [shape: f32[1,8], index: 2, kind: input, shape index: {}]
  %s3 = inlined_call_operand.vmem [shape: f32[16,8], index: 3, kind: output, shape index: {}]
  %s4 = sld [smem:[#allocation0]]
  $region22: #{tpu_custom_call.1} parent=0
    _
  %s6 = ssub.s32 1, %s4
  %s7 = scalar_select 0, %s6, %s4
  // Predicated region
  $region2: #{tpu_custom_call.1} parent=0 // pred_check
    _
  $region3: #{tpu_custom_call.1} parent=0 // pred_check_branch
    %9 = sbr.rel (0) target = $region5
  $region4: #{tpu_custom_call.1} parent=0 // pred_region
    _
  $region5: #{tpu_custom_call.1} parent=0 // pred_fallthru
    _
  // Predicated region
  $region6: #{tpu_custom_call.1} parent=0 // pred_check
    _
  $region7: #{tpu_custom_call.1} parent=0 // pred_check_branch
    %11 = sbr.rel (0) target = $region9
  $region8: #{tpu_custom_call.1} parent=0 // pred_region
    _
  $region9: #{tpu_custom_call.1} parent=0 // pred_fallthru
    _
  // Predicated region
  $region10: #{tpu_custom_call.1} parent=0 // pred_check
    _
  $region11: #{tpu_custom_call.1} parent=0 // pred_check_branch
    %13 = sbr.rel (0) target = $region13
  $region12: #{tpu_custom_call.1} parent=0 // pred_region
    _
  $region13: #{tpu_custom_call.1} parent=0 // pred_fallthru
    _
  %v14 = vld [vmem:[%s0] sm:$0xff]
  %v15 = vld [vmem:[%s0 + $0x8] sm:$0xff]
  %v16 = vld [vmem:[%s1] sm:$0xff]
  %v17 = vld [vmem:[%s1 + $0x8] sm:$0xff]
  %v18 = vld [vmem:[%s2] sm:$0x1]
  %v20 = vlaneseq
  %v21 = vshrl.u32 %v20, 7
  %v22 = vsub.s32 0, %v21
  %v23 = vrot.slane %v18, %v22
  %vm25 = vcmask 130048
  %v27 = vsel %vm25, %v14, 0
  %v30 = vsel %vm25, %v15, 0
  %32 = vmatprep.subr.mxu0 0.0
  %33 = vmatpush1.msra.mxu0 0.0
  %34 = vmatprep.subr.mxu0 0.0
  %35 = vmatpush1.msra.mxu0 0.0
  %36 = vmatprep.subr.mxu0 0.0
  %37 = vmatpush1.msra.mxu0 0.0
  %38 = vmatprep.subr.mxu0 0.0
  %39 = vmatpush1.msra.mxu0 0.0
  %40 = vmatprep.subr.mxu0 0.0
  %41 = vmatpush1.msra.mxu0 0.0
  %42 = vmatprep.subr.mxu0 0.0
  %43 = vmatpush1.msra.mxu0 0.0
  %44 = vmatprep.subr.mxu0 0.0
  %45 = vmatpush1.msra.mxu0 0.0
  %46 = vmatprep.subr.mxu0 0.0
  %47 = vmatpush1.msra.mxu0 0.0
  %48 = vmatprep.subr.mxu0 0.0
  %49 = vmatpush1.msra.mxu0 0.0
  %50 = vmatprep.subr.mxu0 0.0
  %51 = vmatpush1.msra.mxu0 0.0
  %52 = vmatprep.subr.mxu0 0.0
  %53 = vmatpush1.msra.mxu0 0.0
  %54 = vmatprep.subr.mxu0 0.0
  %55 = vmatpush1.msra.mxu0 0.0
  %56 = vmatprep.subr.mxu0 0.0
  %57 = vmatpush1.msra.mxu0 0.0
  %58 = vmatprep.subr.mxu0 0.0
  %59 = vmatpush1.msra.mxu0 0.0
  %60 = vmatprep.subr.mxu0 0.0
  %61 = vmatpush1.msra.mxu0 %v17
  %62 = vmatprep.subr.mxu0 0.0
  %63 = vmatpush1.msra.mxu0 %v16
  %64 = vmatprep.subr.mxu0 0.0
  %65 = vmatpush2.msra.mxu0 0.0
  %66 = vmatprep.subr.mxu0 0.0
  %67 = vmatpush2.msra.mxu0 0.0
  %68 = vmatprep.subr.mxu0 0.0
  %69 = vmatpush2.msra.mxu0 0.0
  %70 = vmatprep.subr.mxu0 0.0
  %71 = vmatpush2.msra.mxu0 0.0
  %72 = vmatprep.subr.mxu0 0.0
  %73 = vmatpush2.msra.mxu0 0.0
  %74 = vmatprep.subr.mxu0 0.0
  %75 = vmatpush2.msra.mxu0 0.0
  %76 = vmatprep.subr.mxu0 0.0
  %77 = vmatpush2.msra.mxu0 0.0
  %78 = vmatprep.subr.mxu0 0.0
  %79 = vmatpush2.msra.mxu0 0.0
  %80 = vmatprep.subr.mxu0 0.0
  %81 = vmatpush2.msra.mxu0 0.0
  %82 = vmatprep.subr.mxu0 0.0
  %83 = vmatpush2.msra.mxu0 0.0
  %84 = vmatprep.subr.mxu0 0.0
  %85 = vmatpush2.msra.mxu0 0.0
  %86 = vmatprep.subr.mxu0 0.0
  %87 = vmatpush2.msra.mxu0 0.0
  %88 = vmatprep.subr.mxu0 0.0
  %89 = vmatpush2.msra.mxu0 0.0
  %90 = vmatprep.subr.mxu0 0.0
  %91 = vmatpush2.msra.mxu0 0.0
  %92 = vmatprep.subr.mxu0 0.0
  %93 = vmatpush2.msra.mxu0 0.0
  %94 = vmatprep.subr.mxu0 0.0
  %95 = vmatpush2.msra.mxu0 0.0
  %96 = vmatprep.mubr.f32.mxu0 0.0
  %97 = vmatmul.mubr.f32.gmra.mxu0 %v27
  %v98 = vpop.f32.mrf.mxu0
  %v99 = vadd.f32 %v23, %v98
  %v100 = vpop.f32.mrf.mxu0
  %101 = vmatprep.mubr.f32.mxu0 0.0
  %102 = vmatmul.mubr.f32.gmra.mxu0 %v30
  %v103 = vpop.f32.mrf.mxu0
  %v104 = vadd.f32 %v23, %v103
  %v105 = vpop.f32.mrf.mxu0
  %106 = vdwg.mxu0
  %vm107 = vcmask 64512
  %108 = vst.msk [vmem:[%s3] sm:$0xff] %vm107, %v99
  %109 = vst.msk [vmem:[%s3 + $0x8] sm:$0xff] %vm107, %v104
  // Predicated region
  $region14: #{tpu_custom_call.1} parent=0 // pred_check
    _
  $region15: #{tpu_custom_call.1} parent=0 // pred_check_branch
    %111 = sbr.rel (0) target = $region17
  $region16: #{tpu_custom_call.1} parent=0 // pred_region
    _
  $region17: #{tpu_custom_call.1} parent=0 // pred_fallthru
    _
  // Predicated region
  $region18: #{tpu_custom_call.1} parent=0 // pred_check
    _
  $region19: #{tpu_custom_call.1} parent=0 // pred_check_branch
    %113 = sbr.rel (0) target = $region21
  $region20: #{tpu_custom_call.1} parent=0 // pred_region
    _
  $region21: #{tpu_custom_call.1} parent=0 // pred_fallthru
    _

</llo_original>
